<compile_context>
chip_gen: v7x
topology: tpu7x:2x2x1
jax: 0.10.0
libtpu: 0.0.40
codegen_flags: <defaults>
</compile_context>

<pallas_src>
import functools

import jax
import jax.numpy as jnp
from jax.experimental import pallas as pl
from jax.experimental.pallas import tpu as pltpu


def _round_up(v, m):
    return (v + m - 1) // m * m


# ---------------------------------------------------------------------------
# Kernels
# ---------------------------------------------------------------------------

def _conv_bias_lrelu_kernel(p_ref, w_ref, b_ref, o_ref, *, neg_slope):
    """norm=False: matmul + bias + LeakyReLU, fully fused per M-tile."""
    x = jnp.dot(p_ref[...], w_ref[...], preferred_element_type=jnp.float32)
    x = x + b_ref[...]                       # (TM, OC) + (1, OC)
    o_ref[...] = jnp.where(x >= 0.0, x, neg_slope * x)


def _conv_stats_kernel(p_ref, w_ref, g_ref, be_ref, y_ref, stats_ref,
                       sum_ref, sq_ref, *, eps, inv_m):
    """norm=True pass 1: tiled conv matmul + cross-tile BN stat accumulation."""
    i = pl.program_id(0)

    @pl.when(i == 0)
    def _():
        sum_ref[...] = jnp.zeros_like(sum_ref)
        sq_ref[...] = jnp.zeros_like(sq_ref)

    # Conv bias is skipped: training-mode BN subtracts the per-channel mean, which
    # cancels a per-channel bias exactly, so adding it would be pure wasted work.
    x = jnp.dot(p_ref[...], w_ref[...], preferred_element_type=jnp.float32)
    y_ref[...] = x

    # Single pass over the tile: per-channel sum and sum-of-squares.
    sum_ref[...] += jnp.sum(x, axis=0, keepdims=True)
    sq_ref[...] += jnp.sum(x * x, axis=0, keepdims=True)

    @pl.when(i == pl.num_programs(0) - 1)
    def _():
        mean = sum_ref[...] * inv_m
        var = jnp.maximum(sq_ref[...] * inv_m - mean * mean, 0.0)
        scale = g_ref[...] * jax.lax.rsqrt(var + eps)
        shift = be_ref[...] - mean * scale
        stats_ref[...] = jnp.concatenate([scale, shift], axis=0)   # (2, OC)


def _bn_lrelu_kernel(y_ref, stats_ref, o_ref, *, neg_slope):
    """norm=True pass 2: per-channel scale/shift + LeakyReLU."""
    st = stats_ref[...]
    x = y_ref[...] * st[0:1, :] + st[1:2, :]
    o_ref[...] = jnp.where(x >= 0.0, x, neg_slope * x)


# ---------------------------------------------------------------------------
# Wrapper
# ---------------------------------------------------------------------------

def _im2col(x, kh, kw, stride, padding):
    """x: (N, C, H, W) -> (N*OH*OW, C*KH*KW), col order (c, kh, kw)."""
    n, c, h, w = x.shape
    xp = jnp.pad(x, ((0, 0), (0, 0), (padding, padding), (padding, padding)))
    oh = (h + 2 * padding - kh) // stride + 1
    ow = (w + 2 * padding - kw) // stride + 1
    cols = []
    for i in range(kh):
        for j in range(kw):
            cols.append(xp[:, :, i:i + stride * oh:stride, j:j + stride * ow:stride])
    p = jnp.stack(cols, axis=0)                   # (KH*KW, N, C, OH, OW)
    p = jnp.transpose(p, (1, 3, 4, 2, 0))         # (N, OH, OW, C, KH*KW)
    return p.reshape(n * oh * ow, c * kh * kw), oh, ow


@functools.partial(
    jax.jit,
    static_argnames=("stride", "padding", "norm", "eps", "neg_slope",
                     "compute_dtype", "block_m"))
def conv_bn_lrelu(x, weight, bias, gamma, beta, *, stride, padding,
                  norm=False, eps=1e-5, neg_slope=0.2,
                  compute_dtype=jnp.bfloat16, block_m=None):
    """x: (N, C_in, H, W) NCHW, weight: (C_out, C_in, KH, KW). Returns NCHW f32."""
    n, c_in, _, _ = x.shape
    c_out, _, kh, kw = weight.shape
    k = c_in * kh * kw
    oc_pad = _round_up(c_out, 128)        # lane-dense output + resident weights

    patches, oh, ow = _im2col(x.astype(compute_dtype), kh, kw, stride, padding)
    m = patches.shape[0]

    if block_m is None:
        # Size the M tile so the double-buffered streamed tiles stay well inside the
        # scoped-VMEM default on every generation (v7x only has 64 MiB physical VMEM).
        in_bpe = jnp.dtype(compute_dtype).itemsize
        per_row = 2 * k * in_bpe + 2 * oc_pad * 4
        block_m = max(8, min(512, (8 * 1024 * 1024 // per_row) // 8 * 8))
    block_m = min(block_m, _round_up(m, 8))
    m_pad = _round_up(m, block_m)
    grid = (m_pad // block_m,)

    if m_pad != m:
        # Zero rows: contribute nothing to the BN sums (we divide by the true M)
        # and are sliced off the output.
        patches = jnp.pad(patches, ((0, m_pad - m), (0, 0)))

    w2d = weight.reshape(c_out, k).T.astype(compute_dtype)           # (K, C_out)
    w2d = jnp.pad(w2d, ((0, 0), (0, oc_pad - c_out)))
    pad_vec = lambda v: jnp.pad(v.astype(jnp.float32).reshape(1, c_out),
                                ((0, 0), (0, oc_pad - c_out)))
    b2d, g2d, be2d = pad_vec(bias), pad_vec(gamma), pad_vec(beta)

    patch_spec = pl.BlockSpec((block_m, k), lambda i: (i, 0))
    w_spec = pl.BlockSpec((k, oc_pad), lambda i: (0, 0))
    vec_spec = pl.BlockSpec((1, oc_pad), lambda i: (0, 0))
    row_spec = pl.BlockSpec((block_m, oc_pad), lambda i: (i, 0))
    stats_spec = pl.BlockSpec((2, oc_pad), lambda i: (0, 0))

    flops = 2 * m_pad * k * oc_pad
    stream_bytes = (m_pad * k * jnp.dtype(compute_dtype).itemsize
                    + k * oc_pad * jnp.dtype(compute_dtype).itemsize
                    + m_pad * oc_pad * 4)

    if not norm:
        out2d = pl.pallas_call(
            functools.partial(_conv_bias_lrelu_kernel, neg_slope=neg_slope),
            out_shape=jax.ShapeDtypeStruct((m_pad, oc_pad), jnp.float32),
            grid=grid,
            in_specs=[patch_spec, w_spec, vec_spec],
            out_specs=row_spec,
            compiler_params=pltpu.CompilerParams(
                dimension_semantics=("parallel",)),
            cost_estimate=pl.CostEstimate(
                flops=flops, transcendentals=0, bytes_accessed=stream_bytes),
        )(patches, w2d, b2d)
    else:
        # Pass 1: conv matmul, cross-tile accumulation of per-channel sum/sum_sq,
        # finalize BN scale/shift on the last program.
        y2d, stats = pl.pallas_call(
            functools.partial(_conv_stats_kernel, eps=eps, inv_m=1.0 / m),
            out_shape=(jax.ShapeDtypeStruct((m_pad, oc_pad), jnp.float32),
                       jax.ShapeDtypeStruct((2, oc_pad), jnp.float32)),
            grid=grid,
            in_specs=[patch_spec, w_spec, vec_spec, vec_spec],
            out_specs=(row_spec, stats_spec),
            scratch_shapes=[pltpu.VMEM((1, oc_pad), jnp.float32),
                            pltpu.VMEM((1, oc_pad), jnp.float32)],
            compiler_params=pltpu.CompilerParams(
                dimension_semantics=("arbitrary",)),   # stats accumulate over M
            cost_estimate=pl.CostEstimate(
                flops=flops, transcendentals=0, bytes_accessed=stream_bytes),
        )(patches, w2d, g2d, be2d)

        # Pass 2: normalize + LeakyReLU; output aliased onto the conv buffer.
        out2d = pl.pallas_call(
            functools.partial(_bn_lrelu_kernel, neg_slope=neg_slope),
            out_shape=jax.ShapeDtypeStruct((m_pad, oc_pad), jnp.float32),
            grid=grid,
            in_specs=[row_spec, stats_spec],
            out_specs=row_spec,
            input_output_aliases={0: 0},
            compiler_params=pltpu.CompilerParams(
                dimension_semantics=("parallel",)),
            cost_estimate=pl.CostEstimate(
                flops=0, transcendentals=0,
                bytes_accessed=2 * m_pad * oc_pad * 4),
        )(y2d, stats)

    out2d = out2d[:m, :c_out]
    # Kernel output is a lane-dense NHWC-style (M, OC) slab; one transpose back to
    # NCHW to preserve the PyTorch module's layout (skip if consumer accepts NHWC).
    return jnp.transpose(out2d.reshape(n, oh, ow, c_out), (0, 3, 1, 2))


# ---------------------------------------------------------------------------
# Reference + test
# ---------------------------------------------------------------------------

def _reference(x, weight, bias, gamma, beta, *, stride, padding,
               norm=False, eps=1e-5, neg_slope=0.2):
    y = jax.lax.conv_general_dilated(
        x.astype(jnp.float32), weight.astype(jnp.float32),
        window_strides=(stride, stride),
        padding=((padding, padding), (padding, padding)),
        dimension_numbers=("NCHW", "OIHW", "NCHW"))
    y = y + bias.reshape(1, -1, 1, 1)
    if norm:
        mean = jnp.mean(y, axis=(0, 2, 3), keepdims=True)
        var = jnp.mean((y - mean) ** 2, axis=(0, 2, 3), keepdims=True)
        y = (y - mean) * jax.lax.rsqrt(var + eps) * gamma.reshape(1, -1, 1, 1) \
            + beta.reshape(1, -1, 1, 1)
    return jnp.where(y >= 0.0, y, neg_slope * y)


if __name__ == "__main__":
    # Module config: Conv_BN_LReLU(in_channels=4, out_channels=8, kernel_size=3,
    #                              stride=1, padding=1, norm=True)
    N, C_IN, H, W = 2, 4, 16, 16
    C_OUT, KS, STRIDE, PAD = 8, 3, 1, 1

    key = jax.random.PRNGKey(0)
    kx, kw_, kb, kg, kbe = jax.random.split(key, 5)

    x = jax.random.normal(kx, (N, C_IN, H, W), dtype=jnp.float32)
    fan_in = C_IN * KS * KS
    bound = 1.0 / (fan_in ** 0.5)
    weight = jax.random.uniform(kw_, (C_OUT, C_IN, KS, KS), jnp.float32,
                                -bound, bound)
    bias = jax.random.uniform(kb, (C_OUT,), jnp.float32, -bound, bound)
    gamma = 1.0 + 0.1 * jax.random.normal(kg, (C_OUT,), jnp.float32)
    beta = 0.1 * jax.random.normal(kbe, (C_OUT,), jnp.float32)

    ref_bn = _reference(x, weight, bias, gamma, beta, stride=STRIDE,
                        padding=PAD, norm=True)

    # 1) norm=True, bf16 MXU path (default), small block_m to exercise the
    #    multi-tile cross-grid BN accumulation (grid = 4).
    out_bf16 = conv_bn_lrelu(x, weight, bias, gamma, beta, stride=STRIDE,
                             padding=PAD, norm=True, block_m=128)
    out_bf16 = jax.block_until_ready(out_bf16)
    if not jnp.allclose(out_bf16, ref_bn, atol=5e-2, rtol=5e-2):
        raise AssertionError("bf16 Pallas kernel mismatch vs reference (norm=True)")

    # 2) norm=True, f32 compute for a tight numerical check of the tiled BN.
    out_f32 = conv_bn_lrelu(x, weight, bias, gamma, beta, stride=STRIDE,
                            padding=PAD, norm=True,
                            compute_dtype=jnp.float32, block_m=256)
    out_f32 = jax.block_until_ready(out_f32)
    if not jnp.allclose(out_f32, ref_bn, atol=2e-4, rtol=2e-4):
        raise AssertionError("f32 Pallas kernel mismatch vs reference (norm=True)")

    # 3) norm=False path (conv + bias + LeakyReLU, fully fused single pass).
    out_nb = conv_bn_lrelu(x, weight, bias, gamma, beta, stride=STRIDE,
                           padding=PAD, norm=False, compute_dtype=jnp.float32)
    out_nb = jax.block_until_ready(out_nb)
    ref_nb = _reference(x, weight, bias, gamma, beta, stride=STRIDE,
                        padding=PAD, norm=False)
    if not jnp.allclose(out_nb, ref_nb, atol=2e-4, rtol=2e-4):
        raise AssertionError("f32 Pallas kernel mismatch vs reference (norm=False)")

    assert out_bf16.shape == (N, C_OUT, H, W)
    print("KERNEL_OK")
</pallas_src>

<mosaic_0001>
module attributes {stable_mosaic.version = 11 : i64} {
  func.func @_bn_lrelu_kernel(%arg0: i32, %arg1: memref<128x128xf32, #tpu.memory_space<vmem>>, %arg2: memref<2x128xf32, #tpu.memory_space<vmem>>, %arg3: memref<128x128xf32, #tpu.memory_space<vmem>>) attributes {dimension_semantics = [#tpu.dimension_semantics<parallel>], iteration_bounds = array<i64: 4>, scalar_prefetch = 0 : i64, scratch_operands = 0 : i64, tpu.core_type = #tpu.core_type<tc>, window_params = [{transform_indices = @transform_0, window_bounds = array<i64: 128, 128>}, {pipeline_mode = #tpu.pipeline_mode<synchronous>, transform_indices = @transform_1, window_bounds = array<i64: 2, 128>}, {transform_indices = @transform_2, window_bounds = array<i64: 128, 128>}]} {
    %c0 = arith.constant 0 : index
    %c0_0 = arith.constant 0 : index
    %0 = vector.load %arg2[%c0, %c0_0] : memref<2x128xf32, #tpu.memory_space<vmem>>, vector<2x128xf32>
    %c0_1 = arith.constant 0 : index
    %c0_2 = arith.constant 0 : index
    %1 = vector.load %arg1[%c0_1, %c0_2] : memref<128x128xf32, #tpu.memory_space<vmem>>, vector<128x128xf32>
    %2 = vector.extract_strided_slice %0 {offsets = [0, 0], sizes = [1, 128], strides = [1, 1]} : vector<2x128xf32> to vector<1x128xf32>
    %3 = vector.broadcast %2 : vector<1x128xf32> to vector<128x128xf32>
    %4 = arith.mulf %1, %3 : vector<128x128xf32>
    %5 = vector.extract_strided_slice %0 {offsets = [1, 0], sizes = [1, 128], strides = [1, 1]} : vector<2x128xf32> to vector<1x128xf32>
    %6 = vector.broadcast %5 : vector<1x128xf32> to vector<128x128xf32>
    %7 = arith.addf %4, %6 : vector<128x128xf32>
    %cst = arith.constant 0.000000e+00 : f32
    %8 = vector.broadcast %cst : f32 to vector<128x128xf32>
    %9 = arith.cmpf oge, %7, %8 : vector<128x128xf32>
    %cst_3 = arith.constant 2.000000e-01 : f32
    %10 = vector.broadcast %cst_3 : f32 to vector<128x128xf32>
    %11 = arith.mulf %10, %7 : vector<128x128xf32>
    %12 = arith.select %9, %7, %11 : vector<128x128xi1>, vector<128x128xf32>
    %c0_4 = arith.constant 0 : index
    %c0_5 = arith.constant 0 : index
    %13 = vector.load %arg3[%c0_4, %c0_5] : memref<128x128xf32, #tpu.memory_space<vmem>>, vector<128x128xf32>
    tpu.vector_store %arg3[%c0_4, %c0_5], %12 {strides = array<i32>} : memref<128x128xf32, #tpu.memory_space<vmem>>, vector<128x128xf32>,
    return
  }
  func.func @transform_0(%arg0: i32) -> (i32, i32) {
    %c0_i32 = arith.constant 0 : i32
    %c0_i32_0 = arith.constant 0 : i32
    return %arg0, %c0_i32 : i32, i32
  }
  func.func @transform_1(%arg0: i32) -> (i32, i32) {
    %c0_i32 = arith.constant 0 : i32
    %c0_i32_0 = arith.constant 0 : i32
    %c0_i32_1 = arith.constant 0 : i32
    return %c0_i32, %c0_i32_0 : i32, i32
  }
  func.func @transform_2(%arg0: i32) -> (i32, i32) {
    %c0_i32 = arith.constant 0 : i32
    %c0_i32_0 = arith.constant 0 : i32
    return %arg0, %c0_i32 : i32, i32
  }
}

module attributes {stable_mosaic.version = 11 : i64} {
  func.func @_conv_stats_kernel(%arg0: i32, %arg1: memref<128x36xbf16, #tpu.memory_space<vmem>>, %arg2: memref<36x128xbf16, #tpu.memory_space<vmem>>, %arg3: memref<1x128xf32, #tpu.memory_space<vmem>>, %arg4: memref<1x128xf32, #tpu.memory_space<vmem>>, %arg5: memref<128x128xf32, #tpu.memory_space<vmem>>, %arg6: memref<2x128xf32, #tpu.memory_space<vmem>>, %arg7: memref<1x128xf32, #tpu.memory_space<vmem>>, %arg8: memref<1x128xf32, #tpu.memory_space<vmem>>) attributes {dimension_semantics = [#tpu.dimension_semantics<arbitrary>], iteration_bounds = array<i64: 4>, scalar_prefetch = 0 : i64, scratch_operands = 2 : i64, tpu.core_type = #tpu.core_type<tc>, window_params = [{transform_indices = @transform_0, window_bounds = array<i64: 128, 36>}, {pipeline_mode = #tpu.pipeline_mode<synchronous>, transform_indices = @transform_1, window_bounds = array<i64: 36, 128>}, {pipeline_mode = #tpu.pipeline_mode<synchronous>, transform_indices = @transform_2, window_bounds = array<i64: 1, 128>}, {pipeline_mode = #tpu.pipeline_mode<synchronous>, transform_indices = @transform_3, window_bounds = array<i64: 1, 128>}, {transform_indices = @transform_4, window_bounds = array<i64: 128, 128>}, {pipeline_mode = #tpu.pipeline_mode<synchronous>, transform_indices = @transform_5, window_bounds = array<i64: 2, 128>}]} {
    %c0_i32 = arith.constant 0 : i32
    %0 = arith.cmpi eq, %arg0, %c0_i32 : i32
    %1 = arith.extui %0 : i1 to i32
    %c0_i32_0 = arith.constant 0 : i32
    %2 = arith.cmpi ne, %1, %c0_i32_0 : i32
    scf.if %2 {
      %cst_17 = arith.constant 0.000000e+00 : f32
      %21 = vector.broadcast %cst_17 : f32 to vector<1x128xf32>
      %c0_18 = arith.constant 0 : index
      %c0_19 = arith.constant 0 : index
      %22 = vector.load %arg7[%c0_18, %c0_19] : memref<1x128xf32, #tpu.memory_space<vmem>>, vector<1x128xf32>
      tpu.vector_store %arg7[%c0_18, %c0_19], %21 {strides = array<i32>} : memref<1x128xf32, #tpu.memory_space<vmem>>, vector<1x128xf32>,
      %cst_20 = arith.constant 0.000000e+00 : f32
      %23 = vector.broadcast %cst_20 : f32 to vector<1x128xf32>
      %c0_21 = arith.constant 0 : index
      %c0_22 = arith.constant 0 : index
      %24 = vector.load %arg8[%c0_21, %c0_22] : memref<1x128xf32, #tpu.memory_space<vmem>>, vector<1x128xf32>
      tpu.vector_store %arg8[%c0_21, %c0_22], %23 {strides = array<i32>} : memref<1x128xf32, #tpu.memory_space<vmem>>, vector<1x128xf32>,
    } else {
    }
    %c0 = arith.constant 0 : index
    %c0_1 = arith.constant 0 : index
    %3 = vector.load %arg1[%c0, %c0_1] : memref<128x36xbf16, #tpu.memory_space<vmem>>, vector<128x36xbf16>
    %c0_2 = arith.constant 0 : index
    %c0_3 = arith.constant 0 : index
    %4 = vector.load %arg2[%c0_2, %c0_3] : memref<36x128xbf16, #tpu.memory_space<vmem>>, vector<36x128xbf16>
    %cst = arith.constant dense<0.000000e+00> : vector<128x128xf32>
    %5 = tpu.matmul %3, %4, %cst {dimension_numbers = #tpu.dot_dimension_numbers<[1], [0], [0], [1], [0, 0, 1, 1], [], []>} : vector<128x36xbf16>, vector<36x128xbf16>, vector<128x128xf32> -> vector<128x128xf32>
    %c0_4 = arith.constant 0 : index
    %c0_5 = arith.constant 0 : index
    %6 = vector.load %arg5[%c0_4, %c0_5] : memref<128x128xf32, #tpu.memory_space<vmem>>, vector<128x128xf32>
    tpu.vector_store %arg5[%c0_4, %c0_5], %5 {strides = array<i32>} : memref<128x128xf32, #tpu.memory_space<vmem>>, vector<128x128xf32>,
    %c0_6 = arith.constant 0 : index
    %c0_7 = arith.constant 0 : index
    %7 = vector.load %arg7[%c0_6, %c0_7] : memref<1x128xf32, #tpu.memory_space<vmem>>, vector<1x128xf32>
    %cst_8 = arith.constant dense<0.000000e+00> : vector<128xf32>
    %8 = vector.multi_reduction <add>, %5, %cst_8 [0] : vector<128x128xf32> to vector<128xf32>
    %9 = vector.shape_cast %8 : vector<128xf32> to vector<1x128xf32>
    %10 = arith.addf %7, %9 : vector<1x128xf32>
    %c0_9 = arith.constant 0 : index
    %c0_10 = arith.constant 0 : index
    %11 = vector.load %arg7[%c0_9, %c0_10] : memref<1x128xf32, #tpu.memory_space<vmem>>, vector<1x128xf32>
    tpu.vector_store %arg7[%c0_9, %c0_10], %10 {strides = array<i32>} : memref<1x128xf32, #tpu.memory_space<vmem>>, vector<1x128xf32>,
    %c0_11 = arith.constant 0 : index
    %c0_12 = arith.constant 0 : index
    %12 = vector.load %arg8[%c0_11, %c0_12] : memref<1x128xf32, #tpu.memory_space<vmem>>, vector<1x128xf32>
    %13 = arith.mulf %5, %5 : vector<128x128xf32>
    %cst_13 = arith.constant dense<0.000000e+00> : vector<128xf32>
    %14 = vector.multi_reduction <add>, %13, %cst_13 [0] : vector<128x128xf32> to vector<128xf32>
    %15 = vector.shape_cast %14 : vector<128xf32> to vector<1x128xf32>
    %16 = arith.addf %12, %15 : vector<1x128xf32>
    %c0_14 = arith.constant 0 : index
    %c0_15 = arith.constant 0 : index
    %17 = vector.load %arg8[%c0_14, %c0_15] : memref<1x128xf32, #tpu.memory_space<vmem>>, vector<1x128xf32>
    tpu.vector_store %arg8[%c0_14, %c0_15], %16 {strides = array<i32>} : memref<1x128xf32, #tpu.memory_space<vmem>>, vector<1x128xf32>,
    %c3_i32 = arith.constant 3 : i32
    %18 = arith.cmpi eq, %arg0, %c3_i32 : i32
    %19 = arith.extui %18 : i1 to i32
    %c0_i32_16 = arith.constant 0 : i32
    %20 = arith.cmpi ne, %19, %c0_i32_16 : i32
    scf.if %20 {
      %c0_17 = arith.constant 0 : index
      %c0_18 = arith.constant 0 : index
      %21 = vector.load %arg7[%c0_17, %c0_18] : memref<1x128xf32, #tpu.memory_space<vmem>>, vector<1x128xf32>
      %cst_19 = arith.constant 0.001953125 : f32
      %22 = vector.broadcast %cst_19 : f32 to vector<1x128xf32>
      %23 = arith.mulf %21, %22 : vector<1x128xf32>
      %c0_20 = arith.constant 0 : index
      %c0_21 = arith.constant 0 : index
      %24 = vector.load %arg8[%c0_20, %c0_21] : memref<1x128xf32, #tpu.memory_space<vmem>>, vector<1x128xf32>
      %cst_22 = arith.constant 0.001953125 : f32
      %25 = vector.broadcast %cst_22 : f32 to vector<1x128xf32>
      %26 = arith.mulf %24, %25 : vector<1x128xf32>
      %27 = arith.mulf %23, %23 : vector<1x128xf32>
      %28 = arith.subf %26, %27 : vector<1x128xf32>
      %cst_23 = arith.constant 0.000000e+00 : f32
      %29 = vector.broadcast %cst_23 : f32 to vector<1x128xf32>
      %30 = arith.maximumf %28, %29 : vector<1x128xf32>
      %c0_24 = arith.constant 0 : index
      %c0_25 = arith.constant 0 : index
      %31 = vector.load %arg3[%c0_24, %c0_25] : memref<1x128xf32, #tpu.memory_space<vmem>>, vector<1x128xf32>
      %cst_26 = arith.constant 9.99999974E-6 : f32
      %32 = vector.broadcast %cst_26 : f32 to vector<1x128xf32>
      %33 = arith.addf %30, %32 : vector<1x128xf32>
      %34 = math.rsqrt %33 : vector<1x128xf32>
      %35 = arith.mulf %31, %34 : vector<1x128xf32>
      %c0_27 = arith.constant 0 : index
      %c0_28 = arith.constant 0 : index
      %36 = vector.load %arg4[%c0_27, %c0_28] : memref<1x128xf32, #tpu.memory_space<vmem>>, vector<1x128xf32>
      %37 = arith.mulf %23, %35 : vector<1x128xf32>
      %38 = arith.subf %36, %37 : vector<1x128xf32>
      %39 = tpu.concatenate %35, %38 in 0 : vector<1x128xf32>, vector<1x128xf32> -> vector<2x128xf32>
      %c0_29 = arith.constant 0 : index
      %c0_30 = arith.constant 0 : index
      %40 = vector.load %arg6[%c0_29, %c0_30] : memref<2x128xf32, #tpu.memory_space<vmem>>, vector<2x128xf32>
      tpu.vector_store %arg6[%c0_29, %c0_30], %39 {strides = array<i32>} : memref<2x128xf32, #tpu.memory_space<vmem>>, vector<2x128xf32>,
    } else {
    }
    return
  }
  func.func @transform_0(%arg0: i32) -> (i32, i32) {
    %c0_i32 = arith.constant 0 : i32
    %c0_i32_0 = arith.constant 0 : i32
    return %arg0, %c0_i32 : i32, i32
  }
  func.func @transform_1(%arg0: i32) -> (i32, i32) {
    %c0_i32 = arith.constant 0 : i32
    %c0_i32_0 = arith.constant 0 : i32
    %c0_i32_1 = arith.constant 0 : i32
    return %c0_i32, %c0_i32_0 : i32, i32
  }
  func.func @transform_2(%arg0: i32) -> (i32, i32) {
    %c0_i32 = arith.constant 0 : i32
    %c0_i32_0 = arith.constant 0 : i32
    %c0_i32_1 = arith.constant 0 : i32
    return %c0_i32, %c0_i32_0 : i32, i32
  }
  func.func @transform_3(%arg0: i32) -> (i32, i32) {
    %c0_i32 = arith.constant 0 : i32
    %c0_i32_0 = arith.constant 0 : i32
    %c0_i32_1 = arith.constant 0 : i32
    return %c0_i32, %c0_i32_0 : i32, i32
  }
  func.func @transform_4(%arg0: i32) -> (i32, i32) {
    %c0_i32 = arith.constant 0 : i32
    %c0_i32_0 = arith.constant 0 : i32
    return %arg0, %c0_i32 : i32, i32
  }
  func.func @transform_5(%arg0: i32) -> (i32, i32) {
    %c0_i32 = arith.constant 0 : i32
    %c0_i32_0 = arith.constant 0 : i32
    %c0_i32_1 = arith.constant 0 : i32
    return %c0_i32, %c0_i32_0 : i32, i32
  }
}

</mosaic_0001>

<llo_original>
// kernel: conv_bn_lrelu.3
$region0: #{conv_bn_lrelu.3}
  #allocation0 [shape = 'u32[]', space=smem, size = 0x4, offset = 0x4, fixed_abs, tag = 'smem constant byte address 0x4 - core index']
  #allocation1 [shape = 'u32[144,128]{1,0:T(1,128)}', space=vmem, size = 0x12000, scoped, tag = 'internal scratch']
  %s0 = inlined_call_operand.vmem [shape: f32[512,128], index: 0, kind: input, shape index: {}, may-alias: {0,2}]
  %s1 = inlined_call_operand.vmem [shape: f32[2,128], index: 1, kind: input, shape index: {}]
  %s2 = inlined_call_operand.vmem [shape: f32[512,128], index: 2, kind: output, shape index: {}, may-alias: {0,2}]
  %s3 = sld [smem:[#allocation0]]
  $region41: #{conv_bn_lrelu.3} parent=0
    _
  %s5 = ssub.s32 1, %s3
  %s6 = scalar_select 0, %s5, %s3
  loop: start=0, step=1, limit=6
  $region2: #{conv_bn_lrelu.3} parent=0 // loop_pre_header
    _
  $region3: #{conv_bn_lrelu.3} parent=0 // loop_header
    %s8 = sphi 0, %s12
    %p9 = scmp.ge.s32.totalorder %s8, 6
    %s18 = sphi 0, %s20
    %s21 = sphi 0, %s18
    %s22 = sphi 0, %s21
    %s38 = sphi 0, %s22
    %s42 = sphi 0, %s42
    %s44 = sphi 0, %s42
    %s45 = sphi 0, %s44
    %s59 = sphi 0, %s45
    %s65 = sphi 0, %s67
    %s68 = sphi 0, %s65
    %s69 = sphi 0, %s68
    %s85 = sphi 0, %s69
  $region4: #{conv_bn_lrelu.3} parent=0 // loop_header_branch
    %11 = sbr.rel (%p9) target = $region8
  $region5: #{conv_bn_lrelu.3} parent=0 // loop_body
    %s13 = ssub.s32 %s8, 1
    %s14 = ssub.s32 %s8, 2
    %s15 = sadd.s32 %s8, 1
    %s16 = ssub.s32 %s8, %s15
    %p17 = scmp.eq.s32.totalorder %s16, 0
    %s19 = sadd.s32 %s18, 1
    %s20 = scalar_select %p17, %s18, %s19
    %p23 = pneg %p17
    %p24 = scmp.eq.s32.totalorder %s8, 3
    %p25 = por %p23, %p24
    %p26 = scmp.ne.s32.totalorder %s18, %s21
    %p27 = scmp.eq.s32.totalorder %s8, 0
    %p28 = por %p26, %p27
    %p29 = scmp.ne.s32.totalorder %s18, %s21
    %p30 = scmp.eq.s32.totalorder %s13, 3
    %p31 = por %p29, %p30
    %p32 = scmp.ne.s32.totalorder %s21, %s22
    %p33 = scmp.eq.s32.totalorder %s13, 0
    %p34 = por %p32, %p33
    %p35 = scmp.ne.s32.totalorder %s21, %s22
    %p36 = scmp.eq.s32.totalorder %s14, 3
    %p37 = por %p35, %p36
    %p39 = scmp.ne.s32.totalorder %s22, %s38
    %p40 = scmp.eq.s32.totalorder %s14, 0
    %p41 = por %p39, %p40
    %s43 = sadd.s32 %s42, 1
    %p46 = scmp.eq.s32.totalorder %s8, 3
    %p47 = scmp.ne.s32.totalorder %s42, %s44
    %p48 = scmp.eq.s32.totalorder %s8, 0
    %p49 = por %p47, %p48
    %p50 = scmp.ne.s32.totalorder %s42, %s44
    %p51 = scmp.eq.s32.totalorder %s13, 3
    %p52 = por %p50, %p51
    %p53 = scmp.ne.s32.totalorder %s44, %s45
    %p54 = scmp.eq.s32.totalorder %s13, 0
    %p55 = por %p53, %p54
    %p56 = scmp.ne.s32.totalorder %s44, %s45
    %p57 = scmp.eq.s32.totalorder %s14, 3
    %p58 = por %p56, %p57
    %p60 = scmp.ne.s32.totalorder %s45, %s59
    %p61 = scmp.eq.s32.totalorder %s14, 0
    %p62 = por %p60, %p61
    %s63 = ssub.s32 %s8, %s15
    %p64 = scmp.eq.s32.totalorder %s63, 0
    %s66 = sadd.s32 %s65, 1
    %s67 = scalar_select %p64, %s65, %s66
    %p70 = pneg %p64
    %p71 = scmp.eq.s32.totalorder %s8, 3
    %p72 = por %p70, %p71
    %p73 = scmp.ne.s32.totalorder %s65, %s68
    %p74 = scmp.eq.s32.totalorder %s8, 0
    %p75 = por %p73, %p74
    %p76 = scmp.ne.s32.totalorder %s65, %s68
    %p77 = scmp.eq.s32.totalorder %s13, 3
    %p78 = por %p76, %p77
    %p79 = scmp.ne.s32.totalorder %s68, %s69
    %p80 = scmp.eq.s32.totalorder %s13, 0
    %p81 = por %p79, %p80
    %p82 = scmp.ne.s32.totalorder %s68, %s69
    %p83 = scmp.eq.s32.totalorder %s14, 3
    %p84 = por %p82, %p83
    %p86 = scmp.ne.s32.totalorder %s69, %s85
    %p87 = scmp.eq.s32.totalorder %s14, 0
    %p88 = por %p86, %p87
    %p89 = scmp.le.s32.totalorder 1, %s8
    %p90 = scmp.lt.s32.totalorder %s8, 5
    %p91 = pnand %p89, %p90
    %p92 = pneg %p91
    // Predicated region
    $region9: #{conv_bn_lrelu.3} parent=5 // pred_check
      _
    $region10: #{conv_bn_lrelu.3} parent=5 // pred_check_branch
      %94 = sbr.rel (%p91) target = $region12
    $region11: #{conv_bn_lrelu.3} parent=5 // pred_region
      %s95 = ssub.s32 %s8, 1
      // Predicated region
      $region13: #{conv_bn_lrelu.3} parent=11 // pred_check
        %p96 = pneg %p55
      $region14: #{conv_bn_lrelu.3} parent=11 // pred_check_branch
        %98 = sbr.rel (%p96) target = $region16
      $region15: #{conv_bn_lrelu.3} parent=11 // pred_region
        _
      $region16: #{conv_bn_lrelu.3} parent=11 // pred_fallthru
        _
    $region12: #{conv_bn_lrelu.3} parent=5 // pred_fallthru
      _
    %p99 = scmp.lt.s32.totalorder %s8, 4
    // Predicated region
    $region17: #{conv_bn_lrelu.3} parent=5 // pred_check
      %p100 = pneg %p99
    $region18: #{conv_bn_lrelu.3} parent=5 // pred_check_branch
      %102 = sbr.rel (%p100) target = $region20
    $region19: #{conv_bn_lrelu.3} parent=5 // pred_region
      // Predicated region
      $region21: #{conv_bn_lrelu.3} parent=19 // pred_check
        %p103 = pneg %p28
      $region22: #{conv_bn_lrelu.3} parent=19 // pred_check_branch
        %105 = sbr.rel (%p103) target = $region24
      $region23: #{conv_bn_lrelu.3} parent=19 // pred_region
        %s106 = smul.u32 16, %s8
        %p107 = scmp.lt.s32.totalorder %s106, 63
        %s108 = scalar_select %p107, %s106, 63
        %s109 = smul.addr %s108, 8
        %s110 = scalar_lea.vmem %s0, %s109
        %s111 = smul.u32 16, %s8
      $region24: #{conv_bn_lrelu.3} parent=19 // pred_fallthru
        _
    $region20: #{conv_bn_lrelu.3} parent=5 // pred_fallthru
      _
    %p112 = scmp.le.s32.totalorder 1, %s8
    %p113 = scmp.lt.s32.totalorder %s8, 5
    %p114 = pnand %p112, %p113
    %p115 = pneg %p114
    // Predicated region
    $region25: #{conv_bn_lrelu.3} parent=5 // pred_check
      _
    $region26: #{conv_bn_lrelu.3} parent=5 // pred_check_branch
      %117 = sbr.rel (%p114) target = $region28
    $region27: #{conv_bn_lrelu.3} parent=5 // pred_region
      %s118 = ssub.s32 %s8, 1
      %s119 = smul.u32 16, %s13
      %p120 = scmp.lt.s32.totalorder %s119, 63
      %s121 = scalar_select %p120, %s119, 63
      %s122 = smul.addr %s121, 8
      %s123 = scalar_lea.vmem %s0, %s122
      %p124 = pneg %p34
      %p125 = pneg %p31
      %p126 = pneg %p55
      %p127 = pneg %p52
      %p128 = pneg %p81
      %p129 = pneg %p78
      %s130 = smul.u32 16, %s13
      %p131 = scmp.lt.s32.totalorder %s130, 63
      %s132 = scalar_select %p131, %s130, 63
      %s133 = smul.addr %s132, 8
      %s134 = scalar_lea.vmem %s2, %s133
      %s135 = smul.u32 16, %s13
      %p136 = scmp.lt.s32.totalorder %s135, 63
      %s137 = scalar_select %p136, %s135, 63
      %s138 = smul.addr %s137, 8
      %s139 = scalar_lea.vmem %s0, %s138
      %s140 = smul.u32 16, %s13
      %s141 = smul.u32 16, %s13
      %p142 = scmp.lt.s32.totalorder %s141, 63
      %s143 = scalar_select %p142, %s141, 63
      %s144 = smul.addr %s143, 8
      %s145 = scalar_lea.vmem %s2, %s144
      %s146 = smul.u32 16, %s13
      %v147 = vld [vmem:[%s1] sm:$0x3]
      %v148 = vld [vmem:[%s139] sm:$0xff]
      %v149 = vld [vmem:[%s139 + $0x8] sm:$0xff]
      %v150 = vld [vmem:[%s139 + $0x10] sm:$0xff]
      %v151 = vld [vmem:[%s139 + $0x18] sm:$0xff]
      %v152 = vld [vmem:[%s139 + $0x20] sm:$0xff]
      %v153 = vld [vmem:[%s139 + $0x28] sm:$0xff]
      %v154 = vld [vmem:[%s139 + $0x30] sm:$0xff]
      %v155 = vld [vmem:[%s139 + $0x38] sm:$0xff]
      %v156 = vld [vmem:[%s139 + $0x40] sm:$0xff]
      %v157 = vld [vmem:[%s139 + $0x48] sm:$0xff]
      %v158 = vld [vmem:[%s139 + $0x50] sm:$0xff]
      %v159 = vld [vmem:[%s139 + $0x58] sm:$0xff]
      %v160 = vld [vmem:[%s139 + $0x60] sm:$0xff]
      %v161 = vld [vmem:[%s139 + $0x68] sm:$0xff]
      %v162 = vld [vmem:[%s139 + $0x70] sm:$0xff]
      %v163 = vld [vmem:[%s139 + $0x78] sm:$0xff]
      %v164 = vlaneseq
      %v165 = vshrl.u32 %v164, 7
      %v166 = vsub.s32 0, %v165
      %v167 = vrot.slane %v147, %v166
      %v168 = vmul.f32 %v148, %v167
      %v169 = vmul.f32 %v149, %v167
      %v170 = vmul.f32 %v150, %v167
      %v171 = vmul.f32 %v151, %v167
      %v172 = vmul.f32 %v152, %v167
      %v173 = vmul.f32 %v153, %v167
      %v174 = vmul.f32 %v154, %v167
      %v175 = vmul.f32 %v155, %v167
      %v176 = vmul.f32 %v156, %v167
      %v177 = vmul.f32 %v157, %v167
      %v178 = vmul.f32 %v158, %v167
      %v179 = vmul.f32 %v159, %v167
      %v180 = vmul.f32 %v160, %v167
      %v181 = vmul.f32 %v161, %v167
      %v182 = vmul.f32 %v162, %v167
      %v183 = vmul.f32 %v163, %v167
      %v184 = vlaneseq
      %v185 = vshrl.u32 %v184, 7
      %v186 = vsub.s32 1, %v185
      %v187 = vrot.slane %v147, %v186
      %v188 = vadd.f32 %v168, %v187
      %v189 = vadd.f32 %v169, %v187
      %v190 = vadd.f32 %v170, %v187
      %v191 = vadd.f32 %v171, %v187
      %v192 = vadd.f32 %v172, %v187
      %v193 = vadd.f32 %v173, %v187
      %v194 = vadd.f32 %v174, %v187
      %v195 = vadd.f32 %v175, %v187
      %v196 = vadd.f32 %v176, %v187
      %v197 = vadd.f32 %v177, %v187
      %v198 = vadd.f32 %v178, %v187
      %v199 = vadd.f32 %v179, %v187
      %v200 = vadd.f32 %v180, %v187
      %v201 = vadd.f32 %v181, %v187
      %v202 = vadd.f32 %v182, %v187
      %v203 = vadd.f32 %v183, %v187
      %vm204 = vcmp.ge.f32.partialorder %v188, 0.0
      %vm205 = vcmp.ge.f32.partialorder %v189, 0.0
      %vm206 = vcmp.ge.f32.partialorder %v190, 0.0
      %vm207 = vcmp.ge.f32.partialorder %v191, 0.0
      %vm208 = vcmp.ge.f32.partialorder %v192, 0.0
      %vm209 = vcmp.ge.f32.partialorder %v193, 0.0
      %vm210 = vcmp.ge.f32.partialorder %v194, 0.0
      %vm211 = vcmp.ge.f32.partialorder %v195, 0.0
      %vm212 = vcmp.ge.f32.partialorder %v196, 0.0
      %vm213 = vcmp.ge.f32.partialorder %v197, 0.0
      %vm214 = vcmp.ge.f32.partialorder %v198, 0.0
      %vm215 = vcmp.ge.f32.partialorder %v199, 0.0
      %vm216 = vcmp.ge.f32.partialorder %v200, 0.0
      %vm217 = vcmp.ge.f32.partialorder %v201, 0.0
      %vm218 = vcmp.ge.f32.partialorder %v202, 0.0
      %vm219 = vcmp.ge.f32.partialorder %v203, 0.0
      %v220 = vmul.f32 %v188, 0.2
      %v221 = vmul.f32 %v189, 0.2
      %v222 = vmul.f32 %v190, 0.2
      %v223 = vmul.f32 %v191, 0.2
      %v224 = vmul.f32 %v192, 0.2
      %v225 = vmul.f32 %v193, 0.2
      %v226 = vmul.f32 %v194, 0.2
      %v227 = vmul.f32 %v195, 0.2
      %v228 = vmul.f32 %v196, 0.2
      %v229 = vmul.f32 %v197, 0.2
      %v230 = vmul.f32 %v198, 0.2
      %v231 = vmul.f32 %v199, 0.2
      %v232 = vmul.f32 %v200, 0.2
      %v233 = vmul.f32 %v201, 0.2
      %v234 = vmul.f32 %v202, 0.2
      %v235 = vmul.f32 %v203, 0.2
      %v236 = vsel %vm204, %v188, %v220
      %v237 = vsel %vm205, %v189, %v221
      %v238 = vsel %vm206, %v190, %v222
      %v239 = vsel %vm207, %v191, %v223
      %v240 = vsel %vm208, %v192, %v224
      %v241 = vsel %vm209, %v193, %v225
      %v242 = vsel %vm210, %v194, %v226
      %v243 = vsel %vm211, %v195, %v227
      %v244 = vsel %vm212, %v196, %v228
      %v245 = vsel %vm213, %v197, %v229
      %v246 = vsel %vm214, %v198, %v230
      %v247 = vsel %vm215, %v199, %v231
      %v248 = vsel %vm216, %v200, %v232
      %v249 = vsel %vm217, %v201, %v233
      %v250 = vsel %vm218, %v202, %v234
      %v251 = vsel %vm219, %v203, %v235
      %252 = vst [vmem:[%s145] sm:$0xff] %v236
      %253 = vst [vmem:[%s145 + $0x8] sm:$0xff] %v237
      %254 = vst [vmem:[%s145 + $0x10] sm:$0xff] %v238
      %255 = vst [vmem:[%s145 + $0x18] sm:$0xff] %v239
      %256 = vst [vmem:[%s145 + $0x20] sm:$0xff] %v240
      %257 = vst [vmem:[%s145 + $0x28] sm:$0xff] %v241
      %258 = vst [vmem:[%s145 + $0x30] sm:$0xff] %v242
      %259 = vst [vmem:[%s145 + $0x38] sm:$0xff] %v243
      %260 = vst [vmem:[%s145 + $0x40] sm:$0xff] %v244
      %261 = vst [vmem:[%s145 + $0x48] sm:$0xff] %v245
      %262 = vst [vmem:[%s145 + $0x50] sm:$0xff] %v246
      %263 = vst [vmem:[%s145 + $0x58] sm:$0xff] %v247
      %264 = vst [vmem:[%s145 + $0x60] sm:$0xff] %v248
      %265 = vst [vmem:[%s145 + $0x68] sm:$0xff] %v249
      %266 = vst [vmem:[%s145 + $0x70] sm:$0xff] %v250
      %267 = vst [vmem:[%s145 + $0x78] sm:$0xff] %v251
      %s268 = smul.u32 16, %s13
      %p269 = scmp.lt.s32.totalorder %s268, 63
      %s270 = scalar_select %p269, %s268, 63
      %s271 = smul.addr %s270, 8
      %s272 = scalar_lea.vmem %s2, %s271
      // Predicated region
      $region29: #{conv_bn_lrelu.3} parent=27 // pred_check
        %p273 = pneg %p78
      $region30: #{conv_bn_lrelu.3} parent=27 // pred_check_branch
        %275 = sbr.rel (%p273) target = $region32
      $region31: #{conv_bn_lrelu.3} parent=27 // pred_region
        %s276 = smul.u32 16, %s13
      $region32: #{conv_bn_lrelu.3} parent=27 // pred_fallthru
        _
    $region28: #{conv_bn_lrelu.3} parent=5 // pred_fallthru
      _
    %p277 = scmp.le.s32.totalorder 2, %s8
    // Predicated region
    $region33: #{conv_bn_lrelu.3} parent=5 // pred_check
      %p278 = pneg %p277
    $region34: #{conv_bn_lrelu.3} parent=5 // pred_check_branch
      %280 = sbr.rel (%p278) target = $region36
    $region35: #{conv_bn_lrelu.3} parent=5 // pred_region
      %s281 = ssub.s32 %s8, 2
      // Predicated region
      $region37: #{conv_bn_lrelu.3} parent=35 // pred_check
        %p282 = pneg %p84
      $region38: #{conv_bn_lrelu.3} parent=35 // pred_check_branch
        %284 = sbr.rel (%p282) target = $region40
      $region39: #{conv_bn_lrelu.3} parent=35 // pred_region
        %s285 = smul.u32 16, %s14
        %p286 = scmp.lt.s32.totalorder %s285, 63
        %s287 = scalar_select %p286, %s285, 63
        %s288 = smul.addr %s287, 8
        %s289 = scalar_lea.vmem %s2, %s288
      $region40: #{conv_bn_lrelu.3} parent=35 // pred_fallthru
        _
    $region36: #{conv_bn_lrelu.3} parent=5 // pred_fallthru
      _
  $region6: #{conv_bn_lrelu.3} parent=0 // loop_footer
    %s12 = sadd.s32 1, %s8
  $region7: #{conv_bn_lrelu.3} parent=0 // loop_footer_branch
    %7 = sbr.rel target = $region3
  $region8: #{conv_bn_lrelu.3} parent=0 // loop_exit
    _

// kernel: conv_bn_lrelu.2
$region0: #{conv_bn_lrelu.2}
  #allocation0 [shape = 'u32[]', space=smem, size = 0x4, offset = 0x4, fixed_abs, tag = 'smem constant byte address 0x4 - core index']
  #allocation1 [shape = 'u32[144,128]{1,0:T(1,128)}', space=vmem, size = 0x12000, scoped, tag = 'internal scratch']
  #allocation2 [shape = 'f32[1,128]{1,0:T(1,128)}', space=vmem, size = 0x200, scoped, tag = 'scratch operand']
  #allocation3 [shape = 'f32[1,128]{1,0:T(1,128)}', space=vmem, size = 0x200, scoped, tag = 'scratch operand']
  %s0 = inlined_call_operand.vmem [shape: bf16[512,36], index: 0, kind: input, shape index: {}]
  %s1 = inlined_call_operand.vmem [shape: bf16[36,128], index: 1, kind: input, shape index: {}]
  %s2 = inlined_call_operand.vmem [shape: f32[1,128], index: 2, kind: input, shape index: {}]
  %s3 = inlined_call_operand.vmem [shape: f32[1,128], index: 3, kind: input, shape index: {}]
  %s4 = inlined_call_operand.vmem [shape: f32[512,128], index: 4, kind: output, shape index: {0}]
  %s5 = inlined_call_operand.vmem [shape: f32[2,128], index: 5, kind: output, shape index: {1}]
  %6 = xla_tuple %s4, %s5
  %s7 = sld [smem:[#allocation0]]
  $region65: #{conv_bn_lrelu.2} parent=0
    _
  %s9 = ssub.s32 1, %s7
  %s10 = scalar_select 0, %s9, %s7
  loop: start=0, step=1, limit=6
  $region2: #{conv_bn_lrelu.2} parent=0 // loop_pre_header
    _
  $region3: #{conv_bn_lrelu.2} parent=0 // loop_header
    %s12 = sphi 0, %s16
    %p13 = scmp.ge.s32.totalorder %s12, 6
    %s22 = sphi 0, %s24
    %s25 = sphi 0, %s22
    %s26 = sphi 0, %s25
    %s42 = sphi 0, %s26
    %s46 = sphi 0, %s46
    %s48 = sphi 0, %s46
    %s49 = sphi 0, %s48
    %s63 = sphi 0, %s49
    %s67 = sphi 0, %s67
    %s69 = sphi 0, %s67
    %s70 = sphi 0, %s69
    %s84 = sphi 0, %s70
    %s88 = sphi 0, %s88
    %s90 = sphi 0, %s88
    %s91 = sphi 0, %s90
    %s105 = sphi 0, %s91
    %s111 = sphi 0, %s113
    %s114 = sphi 0, %s111
    %s115 = sphi 0, %s114
    %s131 = sphi 0, %s115
    %s135 = sphi 0, %s135
    %s137 = sphi 0, %s135
    %s138 = sphi 0, %s137
    %s152 = sphi 0, %s138
  $region4: #{conv_bn_lrelu.2} parent=0 // loop_header_branch
    %15 = sbr.rel (%p13) target = $region8
  $region5: #{conv_bn_lrelu.2} parent=0 // loop_body
    %s17 = ssub.s32 %s12, 1
    %s18 = ssub.s32 %s12, 2
    %s19 = sadd.s32 %s12, 1
    %s20 = ssub.s32 %s12, %s19
    %p21 = scmp.eq.s32.totalorder %s20, 0
    %s23 = sadd.s32 %s22, 1
    %s24 = scalar_select %p21, %s22, %s23
    %p27 = pneg %p21
    %p28 = scmp.eq.s32.totalorder %s12, 3
    %p29 = por %p27, %p28
    %p30 = scmp.ne.s32.totalorder %s22, %s25
    %p31 = scmp.eq.s32.totalorder %s12, 0
    %p32 = por %p30, %p31
    %p33 = scmp.ne.s32.totalorder %s22, %s25
    %p34 = scmp.eq.s32.totalorder %s17, 3
    %p35 = por %p33, %p34
    %p36 = scmp.ne.s32.totalorder %s25, %s26
    %p37 = scmp.eq.s32.totalorder %s17, 0
    %p38 = por %p36, %p37
    %p39 = scmp.ne.s32.totalorder %s25, %s26
    %p40 = scmp.eq.s32.totalorder %s18, 3
    %p41 = por %p39, %p40
    %p43 = scmp.ne.s32.totalorder %s26, %s42
    %p44 = scmp.eq.s32.totalorder %s18, 0
    %p45 = por %p43, %p44
    %s47 = sadd.s32 %s46, 1
    %p50 = scmp.eq.s32.totalorder %s12, 3
    %p51 = scmp.ne.s32.totalorder %s46, %s48
    %p52 = scmp.eq.s32.totalorder %s12, 0
    %p53 = por %p51, %p52
    %p54 = scmp.ne.s32.totalorder %s46, %s48
    %p55 = scmp.eq.s32.totalorder %s17, 3
    %p56 = por %p54, %p55
    %p57 = scmp.ne.s32.totalorder %s48, %s49
    %p58 = scmp.eq.s32.totalorder %s17, 0
    %p59 = por %p57, %p58
    %p60 = scmp.ne.s32.totalorder %s48, %s49
    %p61 = scmp.eq.s32.totalorder %s18, 3
    %p62 = por %p60, %p61
    %p64 = scmp.ne.s32.totalorder %s49, %s63
    %p65 = scmp.eq.s32.totalorder %s18, 0
    %p66 = por %p64, %p65
    %s68 = sadd.s32 %s67, 1
    %p71 = scmp.eq.s32.totalorder %s12, 3
    %p72 = scmp.ne.s32.totalorder %s67, %s69
    %p73 = scmp.eq.s32.totalorder %s12, 0
    %p74 = por %p72, %p73
    %p75 = scmp.ne.s32.totalorder %s67, %s69
    %p76 = scmp.eq.s32.totalorder %s17, 3
    %p77 = por %p75, %p76
    %p78 = scmp.ne.s32.totalorder %s69, %s70
    %p79 = scmp.eq.s32.totalorder %s17, 0
    %p80 = por %p78, %p79
    %p81 = scmp.ne.s32.totalorder %s69, %s70
    %p82 = scmp.eq.s32.totalorder %s18, 3
    %p83 = por %p81, %p82
    %p85 = scmp.ne.s32.totalorder %s70, %s84
    %p86 = scmp.eq.s32.totalorder %s18, 0
    %p87 = por %p85, %p86
    %s89 = sadd.s32 %s88, 1
    %p92 = scmp.eq.s32.totalorder %s12, 3
    %p93 = scmp.ne.s32.totalorder %s88, %s90
    %p94 = scmp.eq.s32.totalorder %s12, 0
    %p95 = por %p93, %p94
    %p96 = scmp.ne.s32.totalorder %s88, %s90
    %p97 = scmp.eq.s32.totalorder %s17, 3
    %p98 = por %p96, %p97
    %p99 = scmp.ne.s32.totalorder %s90, %s91
    %p100 = scmp.eq.s32.totalorder %s17, 0
    %p101 = por %p99, %p100
    %p102 = scmp.ne.s32.totalorder %s90, %s91
    %p103 = scmp.eq.s32.totalorder %s18, 3
    %p104 = por %p102, %p103
    %p106 = scmp.ne.s32.totalorder %s91, %s105
    %p107 = scmp.eq.s32.totalorder %s18, 0
    %p108 = por %p106, %p107
    %s109 = ssub.s32 %s12, %s19
    %p110 = scmp.eq.s32.totalorder %s109, 0
    %s112 = sadd.s32 %s111, 1
    %s113 = scalar_select %p110, %s111, %s112
    %p116 = pneg %p110
    %p117 = scmp.eq.s32.totalorder %s12, 3
    %p118 = por %p116, %p117
    %p119 = scmp.ne.s32.totalorder %s111, %s114
    %p120 = scmp.eq.s32.totalorder %s12, 0
    %p121 = por %p119, %p120
    %p122 = scmp.ne.s32.totalorder %s111, %s114
    %p123 = scmp.eq.s32.totalorder %s17, 3
    %p124 = por %p122, %p123
    %p125 = scmp.ne.s32.totalorder %s114, %s115
    %p126 = scmp.eq.s32.totalorder %s17, 0
    %p127 = por %p125, %p126
    %p128 = scmp.ne.s32.totalorder %s114, %s115
    %p129 = scmp.eq.s32.totalorder %s18, 3
    %p130 = por %p128, %p129
    %p132 = scmp.ne.s32.totalorder %s115, %s131
    %p133 = scmp.eq.s32.totalorder %s18, 0
    %p134 = por %p132, %p133
    %s136 = sadd.s32 %s135, 1
    %p139 = scmp.eq.s32.totalorder %s12, 3
    %p140 = scmp.ne.s32.totalorder %s135, %s137
    %p141 = scmp.eq.s32.totalorder %s12, 0
    %p142 = por %p140, %p141
    %p143 = scmp.ne.s32.totalorder %s135, %s137
    %p144 = scmp.eq.s32.totalorder %s17, 3
    %p145 = por %p143, %p144
    %p146 = scmp.ne.s32.totalorder %s137, %s138
    %p147 = scmp.eq.s32.totalorder %s17, 0
    %p148 = por %p146, %p147
    %p149 = scmp.ne.s32.totalorder %s137, %s138
    %p150 = scmp.eq.s32.totalorder %s18, 3
    %p151 = por %p149, %p150
    %p153 = scmp.ne.s32.totalorder %s138, %s152
    %p154 = scmp.eq.s32.totalorder %s18, 0
    %p155 = por %p153, %p154
    %p156 = scmp.le.s32.totalorder 1, %s12
    %p157 = scmp.lt.s32.totalorder %s12, 5
    %p158 = pnand %p156, %p157
    %p159 = pneg %p158
    // Predicated region
    $region9: #{conv_bn_lrelu.2} parent=5 // pred_check
      _
    $region10: #{conv_bn_lrelu.2} parent=5 // pred_check_branch
      %161 = sbr.rel (%p158) target = $region12
    $region11: #{conv_bn_lrelu.2} parent=5 // pred_region
      %s162 = ssub.s32 %s12, 1
      // Predicated region
      $region13: #{conv_bn_lrelu.2} parent=11 // pred_check
        %p163 = pneg %p59
      $region14: #{conv_bn_lrelu.2} parent=11 // pred_check_branch
        %165 = sbr.rel (%p163) target = $region16
      $region15: #{conv_bn_lrelu.2} parent=11 // pred_region
        _
      $region16: #{conv_bn_lrelu.2} parent=11 // pred_fallthru
        _
      // Predicated region
      $region17: #{conv_bn_lrelu.2} parent=11 // pred_check
        %p166 = pneg %p80
      $region18: #{conv_bn_lrelu.2} parent=11 // pred_check_branch
        %168 = sbr.rel (%p166) target = $region20
      $region19: #{conv_bn_lrelu.2} parent=11 // pred_region
        _
      $region20: #{conv_bn_lrelu.2} parent=11 // pred_fallthru
        _
      // Predicated region
      $region21: #{conv_bn_lrelu.2} parent=11 // pred_check
        %p169 = pneg %p101
      $region22: #{conv_bn_lrelu.2} parent=11 // pred_check_branch
        %171 = sbr.rel (%p169) target = $region24
      $region23: #{conv_bn_lrelu.2} parent=11 // pred_region
        _
      $region24: #{conv_bn_lrelu.2} parent=11 // pred_fallthru
        _
    $region12: #{conv_bn_lrelu.2} parent=5 // pred_fallthru
      _
    %p172 = scmp.lt.s32.totalorder %s12, 4
    // Predicated region
    $region25: #{conv_bn_lrelu.2} parent=5 // pred_check
      %p173 = pneg %p172
    $region26: #{conv_bn_lrelu.2} parent=5 // pred_check_branch
      %175 = sbr.rel (%p173) target = $region28
    $region27: #{conv_bn_lrelu.2} parent=5 // pred_region
      // Predicated region
      $region29: #{conv_bn_lrelu.2} parent=27 // pred_check
        %p176 = pneg %p32
      $region30: #{conv_bn_lrelu.2} parent=27 // pred_check_branch
        %178 = sbr.rel (%p176) target = $region32
      $region31: #{conv_bn_lrelu.2} parent=27 // pred_region
        %s179 = smul.u32 16, %s12
        %p180 = scmp.lt.s32.totalorder %s179, 63
        %s181 = scalar_select %p180, %s179, 63
        %s182 = smul.addr %s181, 4
        %s183 = scalar_lea.vmem %s0, %s182
        %s184 = smul.u32 16, %s12
      $region32: #{conv_bn_lrelu.2} parent=27 // pred_fallthru
        _
    $region28: #{conv_bn_lrelu.2} parent=5 // pred_fallthru
      _
    %p185 = scmp.le.s32.totalorder 1, %s12
    %p186 = scmp.lt.s32.totalorder %s12, 5
    %p187 = pnand %p185, %p186
    %p188 = pneg %p187
    // Predicated region
    $region33: #{conv_bn_lrelu.2} parent=5 // pred_check
      _
    $region34: #{conv_bn_lrelu.2} parent=5 // pred_check_branch
      %190 = sbr.rel (%p187) target = $region36
    $region35: #{conv_bn_lrelu.2} parent=5 // pred_region
      %s191 = ssub.s32 %s12, 1
      %s192 = smul.u32 16, %s17
      %p193 = scmp.lt.s32.totalorder %s192, 63
      %s194 = scalar_select %p193, %s192, 63
      %s195 = smul.addr %s194, 4
      %s196 = scalar_lea.vmem %s0, %s195
      %p197 = pneg %p38
      %p198 = pneg %p35
      %p199 = pneg %p59
      %p200 = pneg %p56
      %p201 = pneg %p80
      %p202 = pneg %p77
      %p203 = pneg %p101
      %p204 = pneg %p98
      %p205 = pneg %p127
      %p206 = pneg %p124
      %s207 = smul.u32 16, %s17
      %p208 = scmp.lt.s32.totalorder %s207, 63
      %s209 = scalar_select %p208, %s207, 63
      %s210 = smul.addr %s209, 8
      %s211 = scalar_lea.vmem %s4, %s210
      %p212 = pneg %p148
      %p213 = pneg %p145
      %s214 = smul.u32 16, %s17
      %p215 = scmp.lt.s32.totalorder %s214, 63
      %s216 = scalar_select %p215, %s214, 63
      %s217 = smul.addr %s216, 4
      %s218 = scalar_lea.vmem %s0, %s217
      %s219 = smul.u32 16, %s17
      %s220 = smul.u32 16, %s17
      %p221 = scmp.lt.s32.totalorder %s220, 63
      %s222 = scalar_select %p221, %s220, 63
      %s223 = smul.addr %s222, 8
      %s224 = scalar_lea.vmem %s4, %s223
      %s225 = smul.u32 16, %s17
      %p227 = scmp.eq.s32.totalorder %s17, 0
      // Predicated region
      $region37: #{conv_bn_lrelu.2} parent=35 // pred_check
        %p228 = pneg %p227
      $region38: #{conv_bn_lrelu.2} parent=35 // pred_check_branch
        %230 = sbr.rel (%p228) target = $region40
      $region39: #{conv_bn_lrelu.2} parent=35 // pred_region
        %231 = vst [vmem:[#allocation2] sm:$0x1] 0.0
        %232 = vst [vmem:[#allocation3] sm:$0x1] 0.0
      $region40: #{conv_bn_lrelu.2} parent=35 // pred_fallthru
        _
      %v233 = vld [vmem:[%s218] sm:$0xf]
      %v234 = vld [vmem:[%s218 + $0x4] sm:$0xf]
      %v235 = vld [vmem:[%s218 + $0x8] sm:$0xf]
      %v236 = vld [vmem:[%s218 + $0xc] sm:$0xf]
      %v237 = vld [vmem:[%s218 + $0x10] sm:$0xf]
      %v238 = vld [vmem:[%s218 + $0x14] sm:$0xf]
      %v239 = vld [vmem:[%s218 + $0x18] sm:$0xf]
      %v240 = vld [vmem:[%s218 + $0x1c] sm:$0xf]
      %v241 = vld [vmem:[%s218 + $0x20] sm:$0xf]
      %v242 = vld [vmem:[%s218 + $0x24] sm:$0xf]
      %v243 = vld [vmem:[%s218 + $0x28] sm:$0xf]
      %v244 = vld [vmem:[%s218 + $0x2c] sm:$0xf]
      %v245 = vld [vmem:[%s218 + $0x30] sm:$0xf]
      %v246 = vld [vmem:[%s218 + $0x34] sm:$0xf]
      %v247 = vld [vmem:[%s218 + $0x38] sm:$0xf]
      %v248 = vld [vmem:[%s218 + $0x3c] sm:$0xf]
      %v249 = vld [vmem:[%s1] sm:$0xf]
      %v250 = vld [vmem:[%s1 + $0x4] sm:$0xf]
      %v251 = vld [vmem:[%s1 + $0x8] sm:$0xf]
      %v252 = vld [vmem:[%s1 + $0xc] sm:$0xf]
      %v253 = vld [vmem:[%s1 + $0x10] sm:$0x3]
      %v270 = vunpack.c.l.b16 %v233
      %v271 = vunpack.c.l.b16 %v234
      %v272 = vunpack.c.l.b16 %v235
      %v273 = vunpack.c.l.b16 %v236
      %v274 = vunpack.c.l.b16 %v237
      %v275 = vunpack.c.l.b16 %v238
      %v276 = vunpack.c.l.b16 %v239
      %v277 = vunpack.c.l.b16 %v240
      %v278 = vunpack.c.l.b16 %v241
      %v279 = vunpack.c.l.b16 %v242
      %v280 = vunpack.c.l.b16 %v243
      %v281 = vunpack.c.l.b16 %v244
      %v282 = vunpack.c.l.b16 %v245
      %v283 = vunpack.c.l.b16 %v246
      %v284 = vunpack.c.l.b16 %v247
      %v285 = vunpack.c.l.b16 %v248
      %v286 = vpack.c.b16 %v271, %v270
      %v287 = vpack.c.b16 %v273, %v272
      %v288 = vpack.c.b16 %v275, %v274
      %v289 = vpack.c.b16 %v277, %v276
      %v290 = vpack.c.b16 %v279, %v278
      %v291 = vpack.c.b16 %v281, %v280
      %v292 = vpack.c.b16 %v283, %v282
      %v293 = vpack.c.b16 %v285, %v284
      %v299 = vunpack.c.l.b16 %v249
      %v300 = vunpack.c.l.b16 %v250
      %v301 = vunpack.c.l.b16 %v251
      %v302 = vunpack.c.l.b16 %v252
      %v303 = vunpack.c.l.b16 %v253
      %v304 = vpack.c.b16 %v300, %v299
      %v305 = vpack.c.b16 %v302, %v301
      %v306 = vpack.c.b16 %v303, %v303
      %vm309 = vcmask 293888
      %v311 = vsel %vm309, %v286, 0
      %v314 = vsel %vm309, %v287, 0
      %v317 = vsel %vm309, %v288, 0
      %v320 = vsel %vm309, %v289, 0
      %v323 = vsel %vm309, %v290, 0
      %v326 = vsel %vm309, %v291, 0
      %v329 = vsel %vm309, %v292, 0
      %v332 = vsel %vm309, %v293, 0
      %vm334 = vcmask 1041408
      %v336 = vsel %vm334, %v306, 0
      %338 = vmatprep.subr.bf16.mxu0 0
      %339 = vmatpush1.bf16.msra.mxu0 %v304
      %340 = vmatprep.subr.bf16.mxu0 0
      %341 = vmatpush1.bf16.msra.mxu0 %v305
      %342 = vmatprep.subr.bf16.mxu0 0
      %343 = vmatpush1.bf16.msra.mxu0 %v336
      %344 = vmatprep.subr.bf16.mxu0 0
      %345 = vmatpush1.bf16.msra.mxu0 0
      %346 = vmatprep.subr.bf16.mxu0 0
      %347 = vmatpush1.bf16.msra.mxu0 0
      %348 = vmatprep.subr.bf16.mxu0 0
      %349 = vmatpush1.bf16.msra.mxu0 0
      %350 = vmatprep.subr.bf16.mxu0 0
      %351 = vmatpush1.bf16.msra.mxu0 0
      %352 = vmatprep.subr.bf16.mxu0 0
      %353 = vmatpush1.bf16.msra.mxu0 0
      %354 = vmatprep.subr.bf16.mxu0 0
      %355 = vmatpush1.bf16.msra.mxu0 0
      %356 = vmatprep.subr.bf16.mxu0 0
      %357 = vmatpush1.bf16.msra.mxu0 0
      %358 = vmatprep.subr.bf16.mxu0 0
      %359 = vmatpush1.bf16.msra.mxu0 0
      %360 = vmatprep.subr.bf16.mxu0 0
      %361 = vmatpush1.bf16.msra.mxu0 0
      %362 = vmatprep.subr.bf16.mxu0 0
      %363 = vmatpush1.bf16.msra.mxu0 0
      %364 = vmatprep.subr.bf16.mxu0 0
      %365 = vmatpush1.bf16.msra.mxu0 0
      %366 = vmatprep.subr.bf16.mxu0 0
      %367 = vmatpush1.bf16.msra.mxu0 0
      %368 = vmatprep.subr.bf16.mxu0 0
      %369 = vmatpush1.bf16.msra.mxu0 0
      %370 = vmatprep.mubr.bf16.mxu0 0
      %371 = vmatmul.mubr.bf16.gmra.mrb[0].mxu0 %v311
      %v372 = vpop.f32.mrb[0].mxu0
      %v373 = vadd.f32 0.0, %v372
      %v374 = vpop.f32.mrb[0].mxu0
      %v375 = vpop.f32.mrb[0].mxu0
      %v376 = vadd.f32 0.0, %v375
      %v377 = vpop.f32.mrb[0].mxu0
      %378 = vmatprep.mubr.bf16.mxu0 0
      %379 = vmatmul.mubr.bf16.gmra.mrb[0].mxu0 %v314
      %v380 = vpop.f32.mrb[0].mxu0
      %v381 = vadd.f32 0.0, %v380
      %v382 = vpop.f32.mrb[0].mxu0
      %v383 = vpop.f32.mrb[0].mxu0
      %v384 = vadd.f32 0.0, %v383
      %v385 = vpop.f32.mrb[0].mxu0
      %386 = vmatprep.mubr.bf16.mxu0 0
      %387 = vmatmul.mubr.bf16.gmra.mrb[0].mxu0 %v317
      %v388 = vpop.f32.mrb[0].mxu0
      %v389 = vadd.f32 0.0, %v388
      %v390 = vpop.f32.mrb[0].mxu0
      %v391 = vpop.f32.mrb[0].mxu0
      %v392 = vadd.f32 0.0, %v391
      %v393 = vpop.f32.mrb[0].mxu0
      %394 = vmatprep.mubr.bf16.mxu0 0
      %395 = vmatmul.mubr.bf16.gmra.mrb[0].mxu0 %v320
      %v396 = vpop.f32.mrb[0].mxu0
      %v397 = vadd.f32 0.0, %v396
      %v398 = vpop.f32.mrb[0].mxu0
      %v399 = vpop.f32.mrb[0].mxu0
      %v400 = vadd.f32 0.0, %v399
      %v401 = vpop.f32.mrb[0].mxu0
      %402 = vmatprep.mubr.bf16.mxu0 0
      %403 = vmatmul.mubr.bf16.gmra.mrb[0].mxu0 %v323
      %v404 = vpop.f32.mrb[0].mxu0
      %v405 = vadd.f32 0.0, %v404
      %v406 = vpop.f32.mrb[0].mxu0
      %v407 = vpop.f32.mrb[0].mxu0
      %v408 = vadd.f32 0.0, %v407
      %v409 = vpop.f32.mrb[0].mxu0
      %410 = vmatprep.mubr.bf16.mxu0 0
      %411 = vmatmul.mubr.bf16.gmra.mrb[0].mxu0 %v326
      %v412 = vpop.f32.mrb[0].mxu0
      %v413 = vadd.f32 0.0, %v412
      %v414 = vpop.f32.mrb[0].mxu0
      %v415 = vpop.f32.mrb[0].mxu0
      %v416 = vadd.f32 0.0, %v415
      %v417 = vpop.f32.mrb[0].mxu0
      %418 = vmatprep.mubr.bf16.mxu0 0
      %419 = vmatmul.mubr.bf16.gmra.mrb[0].mxu0 %v329
      %v420 = vpop.f32.mrb[0].mxu0
      %v421 = vadd.f32 0.0, %v420
      %v422 = vpop.f32.mrb[0].mxu0
      %v423 = vpop.f32.mrb[0].mxu0
      %v424 = vadd.f32 0.0, %v423
      %v425 = vpop.f32.mrb[0].mxu0
      %426 = vmatprep.mubr.bf16.mxu0 0
      %427 = vmatmul.mubr.bf16.gmra.mrb[0].mxu0 %v332
      %v428 = vpop.f32.mrb[0].mxu0
      %v429 = vadd.f32 0.0, %v428
      %v430 = vpop.f32.mrb[0].mxu0
      %v431 = vpop.f32.mrb[0].mxu0
      %v432 = vadd.f32 0.0, %v431
      %v433 = vpop.f32.mrb[0].mxu0
      %434 = vdwg.mxu0
      %435 = vst [vmem:[%s224] sm:$0xff] %v373
      %436 = vst [vmem:[%s224 + $0x8] sm:$0xff] %v376
      %437 = vst [vmem:[%s224 + $0x10] sm:$0xff] %v381
      %438 = vst [vmem:[%s224 + $0x18] sm:$0xff] %v384
      %439 = vst [vmem:[%s224 + $0x20] sm:$0xff] %v389
      %440 = vst [vmem:[%s224 + $0x28] sm:$0xff] %v392
      %441 = vst [vmem:[%s224 + $0x30] sm:$0xff] %v397
      %442 = vst [vmem:[%s224 + $0x38] sm:$0xff] %v400
      %443 = vst [vmem:[%s224 + $0x40] sm:$0xff] %v405
      %444 = vst [vmem:[%s224 + $0x48] sm:$0xff] %v408
      %445 = vst [vmem:[%s224 + $0x50] sm:$0xff] %v413
      %446 = vst [vmem:[%s224 + $0x58] sm:$0xff] %v416
      %447 = vst [vmem:[%s224 + $0x60] sm:$0xff] %v421
      %448 = vst [vmem:[%s224 + $0x68] sm:$0xff] %v424
      %449 = vst [vmem:[%s224 + $0x70] sm:$0xff] %v429
      %450 = vst [vmem:[%s224 + $0x78] sm:$0xff] %v432
      %v451 = vld [vmem:[#allocation2] sm:$0x1]
      %v452 = vadd.f32 %v373, %v376
      %v453 = vadd.f32 %v452, %v381
      %v454 = vadd.f32 %v453, %v384
      %v455 = vadd.f32 %v454, %v389
      %v456 = vadd.f32 %v455, %v392
      %v457 = vadd.f32 %v456, %v397
      %v458 = vadd.f32 %v457, %v400
      %v459 = vadd.f32 %v458, %v405
      %v460 = vadd.f32 %v459, %v408
      %v461 = vadd.f32 %v460, %v413
      %v462 = vadd.f32 %v461, %v416
      %v463 = vadd.f32 %v462, %v421
      %v464 = vadd.f32 %v463, %v424
      %v465 = vadd.f32 %v464, %v429
      %v466 = vadd.f32 %v465, %v432
      %v467 = vrot.slane %v466, 4
      %v468 = vadd.f32 %v466, %v467
      %v469 = vrot.slane %v468, 2
      %v470 = vadd.f32 %v468, %v469
      %v471 = vrot.slane %v470, 1
      %v472 = vadd.f32 %v470, %v471
      %v473 = vadd.f32 %v451, %v472
      %474 = vst [vmem:[#allocation2] sm:$0x1] %v473
      %v475 = vld [vmem:[#allocation3] sm:$0x1]
      %v476 = vmul.f32 %v373, %v373
      %v477 = vmul.f32 %v376, %v376
      %v478 = vmul.f32 %v381, %v381
      %v479 = vmul.f32 %v384, %v384
      %v480 = vmul.f32 %v389, %v389
      %v481 = vmul.f32 %v392, %v392
      %v482 = vmul.f32 %v397, %v397
      %v483 = vmul.f32 %v400, %v400
      %v484 = vmul.f32 %v405, %v405
      %v485 = vmul.f32 %v408, %v408
      %v486 = vmul.f32 %v413, %v413
      %v487 = vmul.f32 %v416, %v416
      %v488 = vmul.f32 %v421, %v421
      %v489 = vmul.f32 %v424, %v424
      %v490 = vmul.f32 %v429, %v429
      %v491 = vmul.f32 %v432, %v432
      %v492 = vadd.f32 %v476, %v477
      %v493 = vadd.f32 %v492, %v478
      %v494 = vadd.f32 %v493, %v479
      %v495 = vadd.f32 %v494, %v480
      %v496 = vadd.f32 %v495, %v481
      %v497 = vadd.f32 %v496, %v482
      %v498 = vadd.f32 %v497, %v483
      %v499 = vadd.f32 %v498, %v484
      %v500 = vadd.f32 %v499, %v485
      %v501 = vadd.f32 %v500, %v486
      %v502 = vadd.f32 %v501, %v487
      %v503 = vadd.f32 %v502, %v488
      %v504 = vadd.f32 %v503, %v489
      %v505 = vadd.f32 %v504, %v490
      %v506 = vadd.f32 %v505, %v491
      %v507 = vrot.slane %v506, 4
      %v508 = vadd.f32 %v506, %v507
      %v509 = vrot.slane %v508, 2
      %v510 = vadd.f32 %v508, %v509
      %v511 = vrot.slane %v510, 1
      %v512 = vadd.f32 %v510, %v511
      %v513 = vadd.f32 %v475, %v512
      %514 = vst [vmem:[#allocation3] sm:$0x1] %v513
      %p515 = scmp.eq.s32.totalorder %s17, 3
      // Predicated region
      $region41: #{conv_bn_lrelu.2} parent=35 // pred_check
        %p516 = pneg %p515
      $region42: #{conv_bn_lrelu.2} parent=35 // pred_check_branch
        %518 = sbr.rel (%p516) target = $region44
      $region43: #{conv_bn_lrelu.2} parent=35 // pred_region
        %v519 = vld [vmem:[#allocation2] sm:$0x1]
        %v520 = vmul.f32 %v519, 0.001953125
        %v521 = vld [vmem:[#allocation3] sm:$0x1]
        %v522 = vmul.f32 %v521, 0.001953125
        %v523 = vmul.f32 %v520, %v520
        %v524 = vsub.f32 %v522, %v523
        %v525 = vmax.f32 %v524, 0.0
        %v526 = vld [vmem:[%s2] sm:$0x1]
        %v527 = vadd.f32 %v525, 1e-05
        %v528 = vrsqrt.pop %v527
        %v529 = vmul.f32 %v526, %v528
        %v530 = vld [vmem:[%s3] sm:$0x1]
        %v531 = vmul.f32 %v520, %v529
        %v532 = vsub.f32 %v530, %v531
        %v534 = vlaneseq
        %v535 = vshrl.u32 %v534, 7
        %v536 = vsub.s32 0, %v535
        %v537 = vrot.slane %v532, %v536
        %vm539 = vcmask 1040384
        %v540 = vsel %vm539, %v529, %v537
        %541 = vst [vmem:[%s5] sm:$0x3] %v540
      $region44: #{conv_bn_lrelu.2} parent=35 // pred_fallthru
        _
      %s542 = smul.u32 16, %s17
      %p543 = scmp.lt.s32.totalorder %s542, 63
      %s544 = scalar_select %p543, %s542, 63
      %s545 = smul.addr %s544, 8
      %s546 = scalar_lea.vmem %s4, %s545
      // Predicated region
      $region45: #{conv_bn_lrelu.2} parent=35 // pred_check
        %p547 = pneg %p124
      $region46: #{conv_bn_lrelu.2} parent=35 // pred_check_branch
        %549 = sbr.rel (%p547) target = $region48
      $region47: #{conv_bn_lrelu.2} parent=35 // pred_region
        %s550 = smul.u32 16, %s17
      $region48: #{conv_bn_lrelu.2} parent=35 // pred_fallthru
        _
      // Predicated region
      $region49: #{conv_bn_lrelu.2} parent=35 // pred_check
        %p551 = pneg %p145
      $region50: #{conv_bn_lrelu.2} parent=35 // pred_check_branch
        %553 = sbr.rel (%p551) target = $region52
      $region51: #{conv_bn_lrelu.2} parent=35 // pred_region
        _
      $region52: #{conv_bn_lrelu.2} parent=35 // pred_fallthru
        _
      // Predicated region
      $region53: #{conv_bn_lrelu.2} parent=35 // pred_check
        %p554 = pneg %p145
      $region54: #{conv_bn_lrelu.2} parent=35 // pred_check_branch
        %556 = sbr.rel (%p554) target = $region56
      $region55: #{conv_bn_lrelu.2} parent=35 // pred_region
        _
      $region56: #{conv_bn_lrelu.2} parent=35 // pred_fallthru
        _
    $region36: #{conv_bn_lrelu.2} parent=5 // pred_fallthru
      _
    %p557 = scmp.le.s32.totalorder 2, %s12
    // Predicated region
    $region57: #{conv_bn_lrelu.2} parent=5 // pred_check
      %p558 = pneg %p557
    $region58: #{conv_bn_lrelu.2} parent=5 // pred_check_branch
      %560 = sbr.rel (%p558) target = $region60
    $region59: #{conv_bn_lrelu.2} parent=5 // pred_region
      %s561 = ssub.s32 %s12, 2
      // Predicated region
      $region61: #{conv_bn_lrelu.2} parent=59 // pred_check
        %p562 = pneg %p130
      $region62: #{conv_bn_lrelu.2} parent=59 // pred_check_branch
        %564 = sbr.rel (%p562) target = $region64
      $region63: #{conv_bn_lrelu.2} parent=59 // pred_region
        %s565 = smul.u32 16, %s18
        %p566 = scmp.lt.s32.totalorder %s565, 63
        %s567 = scalar_select %p566, %s565, 63
        %s568 = smul.addr %s567, 8
        %s569 = scalar_lea.vmem %s4, %s568
      $region64: #{conv_bn_lrelu.2} parent=59 // pred_fallthru
        _
    $region60: #{conv_bn_lrelu.2} parent=5 // pred_fallthru
      _
  $region6: #{conv_bn_lrelu.2} parent=0 // loop_footer
    %s16 = sadd.s32 1, %s12
  $region7: #{conv_bn_lrelu.2} parent=0 // loop_footer_branch
    %11 = sbr.rel target = $region3
  $region8: #{conv_bn_lrelu.2} parent=0 // loop_exit
    _

</llo_original>
